<compile_context>
chip_gen: v5e
topology: v5e:2x2
jax: 0.10.0
libtpu: 0.0.40
codegen_flags: <defaults>
</compile_context>

<pallas_src>
import functools
import math

import jax
import jax.numpy as jnp
from jax.experimental import pallas as pl
from jax.experimental.pallas import tpu as pltpu


# ---------------------------------------------------------------------------
# Kernels
# ---------------------------------------------------------------------------

def _pe_add_kernel(x_ref, pe_ref, o_ref):
    # x_ref/o_ref: (tb, tc);  pe_ref: (1, tc) -> broadcast over rows.
    o_ref[...] = x_ref[...] + pe_ref[...]


def _pe_add_dropout_kernel(x_ref, pe_ref, bits_ref, o_ref, *,
                           drop_threshold, inv_keep):
    # bits_ref holds uniform int32 values in [0, 2**31); drop iff bits < p * 2**31.
    # TODO(synk): on real TPU hardware pltpu.prng_random_bits could generate the
    # bits in-kernel (no extra HBM read), but it has no interpret-mode lowering.
    val = x_ref[...] + pe_ref[...]
    keep = bits_ref[...] >= jnp.int32(drop_threshold)
    o_ref[...] = jnp.where(keep,
                           val * jnp.asarray(inv_keep, dtype=val.dtype),
                           jnp.zeros_like(val))


# ---------------------------------------------------------------------------
# Tiling helpers
# ---------------------------------------------------------------------------

def _largest_aligned_divisor(n, align, cap):
    """Largest d with d | n, d % align == 0, d <= cap.  None if no such d."""
    cap = min(cap, n)
    best = None
    i = 1
    while i * i <= n:
        if n % i == 0:
            for d in (i, n // i):
                if d % align == 0 and d <= cap and (best is None or d > best):
                    best = d
        i += 1
    return best


def _choose_tiles(B, N, itemsize):
    """Pick (row_tile, col_tile) for the flattened (B, N) view.

    Target ~2 MiB per x tile: big enough to amortize the ~0.35us per-grid-step
    overhead (>=512 sublanes at 128+ lanes), small enough that double-buffered
    x / pe / dropout-bits / out stay well under every generation's VMEM.
    """
    max_tile_elems = (2 * 1024 * 1024) // itemsize

    # Rows (sublane dim): must be a multiple of 8 or equal the full dim.
    if B % 8 == 0:
        tb = _largest_aligned_divisor(B, 8, max(8, min(B, 1024))) or B
    else:
        tb = B

    # Cols (lane dim): multiple of 128 for lane-dense stores, or the full dim.
    col_cap = max(128, max_tile_elems // max(tb, 1))
    if N % 128 == 0:
        tc = _largest_aligned_divisor(N, 128, min(N, col_cap)) or N
    else:
        tc = N
    return tb, tc


# ---------------------------------------------------------------------------
# Forward wrapper
# ---------------------------------------------------------------------------

def positional_encoding_forward(x, pe, *, p_drop=0.1, train=False, rng_key=None):
    """x: (B, L, D), pe: (1, L, D) (or (L, D)).  Returns x + pe broadcast over
    the batch dim, with inverted dropout applied in-kernel when train=True."""
    B, L, D = x.shape
    pe = jnp.asarray(pe)
    if pe.ndim == 3:
        assert pe.shape == (1, L, D), f"pe shape {pe.shape} != (1, {L}, {D})"
    else:
        assert pe.shape == (L, D), f"pe shape {pe.shape} != ({L}, {D})"

    N = L * D
    x2 = x.reshape(B, N)                       # lane-dense 2D view
    pe2 = pe.reshape(1, N).astype(x.dtype)     # pre-cast: halves pe traffic for bf16

    tb, tc = _choose_tiles(B, N, jnp.dtype(x.dtype).itemsize)
    n_rows, n_cols = B // tb, N // tc
    # Column tiles outer, row tiles inner -> the shared pe tile is only DMA'd
    # when the column index changes.
    grid = (n_cols, n_rows)

    cparams = pltpu.CompilerParams(
        dimension_semantics=("parallel", "parallel"),
        vmem_limit_bytes=48 * 1024 * 1024,
    )

    x_spec = pl.BlockSpec((tb, tc), lambda j, i: (i, j))
    pe_spec = pl.BlockSpec((1, tc), lambda j, i: (0, j))
    out_spec = pl.BlockSpec((tb, tc), lambda j, i: (i, j))

    if train and p_drop > 0.0:
        if rng_key is None:
            rng_key = jax.random.PRNGKey(0)
        # Uniform int32 in [0, 2**31); drop element iff bits < p * 2**31.
        bits = (jax.random.bits(rng_key, (B, N), dtype=jnp.uint32)
                >> jnp.uint32(1)).astype(jnp.int32)
        drop_threshold = int(round(p_drop * (2.0 ** 31)))
        kern = functools.partial(_pe_add_dropout_kernel,
                                 drop_threshold=drop_threshold,
                                 inv_keep=1.0 / (1.0 - p_drop))
        out2 = pl.pallas_call(
            kern,
            out_shape=jax.ShapeDtypeStruct((B, N), x.dtype),
            grid_spec=pltpu.PrefetchScalarGridSpec(
                num_scalar_prefetch=0,
                grid=grid,
                in_specs=[x_spec, pe_spec, x_spec],
                out_specs=out_spec,
            ),
            compiler_params=cparams,
        )(x2, pe2, bits)
    else:
        out2 = pl.pallas_call(
            _pe_add_kernel,
            out_shape=jax.ShapeDtypeStruct((B, N), x.dtype),
            grid_spec=pltpu.PrefetchScalarGridSpec(
                num_scalar_prefetch=0,
                grid=grid,
                in_specs=[x_spec, pe_spec],
                out_specs=out_spec,
            ),
            compiler_params=cparams,
        )(x2, pe2)

    return out2.reshape(B, L, D)


def make_positional_encoding(d_model, max_len):
    """Deterministic sin/cos PE table, identical to the PyTorch __init__."""
    position = jnp.arange(0, max_len, dtype=jnp.float32)[:, None]        # (L, 1)
    div_term = jnp.exp(
        jnp.arange(0, d_model, 2, dtype=jnp.float32)
        * (-math.log(10000.0) / d_model))                                # (D/2,)
    angles = position * div_term                                         # (L, D/2)
    pe = jnp.zeros((max_len, d_model), dtype=jnp.float32)
    pe = pe.at[:, 0::2].set(jnp.sin(angles))
    pe = pe.at[:, 1::2].set(jnp.cos(angles))
    return pe[None, :, :]                                                # (1, L, D)


if __name__ == "__main__":
    B, L, D = 2, 8, 32   # batch=2, max_len=8, d_model=32
    key = jax.random.PRNGKey(0)
    kx, kd = jax.random.split(key)
    x = jax.random.normal(kx, (B, L, D), dtype=jnp.float32)
    pe = make_positional_encoding(d_model=D, max_len=L)

    # Eval-mode forward (dropout == identity): exact, deterministic check.
    out = positional_encoding_forward(x, pe, train=False)
    out = jax.block_until_ready(out)
    ref = x + pe  # broadcast over batch, same as x + self.pe[:x.size(0), :]
    assert out.shape == x.shape and out.dtype == x.dtype
    assert jnp.allclose(out, ref, atol=1e-6, rtol=1e-6)

    # Train-mode forward (in-kernel inverted dropout with host-generated bits).
    out_train = positional_encoding_forward(x, pe, train=True, rng_key=kd)
    out_train = jax.block_until_ready(out_train)
    assert out_train.shape == x.shape and out_train.dtype == x.dtype
    # Dropped elements are exactly 0, kept elements are ref / 0.9.
    dropped = out_train == 0.0
    assert jnp.allclose(jnp.where(dropped, 0.0, out_train),
                        jnp.where(dropped, 0.0, ref / 0.9),
                        atol=1e-5, rtol=1e-5)

    print("KERNEL_OK")
</pallas_src>

<mosaic_0001>
module attributes {stable_mosaic.version = 11 : i64} {
  func.func @_pe_add_kernel(%arg0: i32, %arg1: i32, %arg2: memref<2x256xf32, #tpu.memory_space<vmem>>, %arg3: memref<1x256xf32, #tpu.memory_space<vmem>>, %arg4: memref<2x256xf32, #tpu.memory_space<vmem>>) attributes {dimension_semantics = [#tpu.dimension_semantics<parallel>, #tpu.dimension_semantics<parallel>], iteration_bounds = array<i64: 1, 1>, scalar_prefetch = 0 : i64, scratch_operands = 0 : i64, tpu.core_type = #tpu.core_type<tc>, window_params = [{transform_indices = @transform_0, window_bounds = array<i64: 2, 256>}, {transform_indices = @transform_1, window_bounds = array<i64: 1, 256>}, {transform_indices = @transform_2, window_bounds = array<i64: 2, 256>}]} {
    %c0 = arith.constant 0 : index
    %c0_0 = arith.constant 0 : index
    %0 = vector.load %arg2[%c0, %c0_0] : memref<2x256xf32, #tpu.memory_space<vmem>>, vector<2x256xf32>
    %c0_1 = arith.constant 0 : index
    %c0_2 = arith.constant 0 : index
    %1 = vector.load %arg3[%c0_1, %c0_2] : memref<1x256xf32, #tpu.memory_space<vmem>>, vector<1x256xf32>
    %2 = vector.broadcast %1 : vector<1x256xf32> to vector<2x256xf32>
    %3 = arith.addf %0, %2 : vector<2x256xf32>
    %c0_3 = arith.constant 0 : index
    %c0_4 = arith.constant 0 : index
    %4 = vector.load %arg4[%c0_3, %c0_4] : memref<2x256xf32, #tpu.memory_space<vmem>>, vector<2x256xf32>
    tpu.vector_store %arg4[%c0_3, %c0_4], %3 {strides = array<i32>} : memref<2x256xf32, #tpu.memory_space<vmem>>, vector<2x256xf32>,
    return
  }
  func.func @transform_0(%arg0: i32, %arg1: i32) -> (i32, i32) {
    %c0_i32 = arith.constant 0 : i32
    return %arg1, %arg0 : i32, i32
  }
  func.func @transform_1(%arg0: i32, %arg1: i32) -> (i32, i32) {
    %c0_i32 = arith.constant 0 : i32
    %c0_i32_0 = arith.constant 0 : i32
    return %c0_i32, %arg0 : i32, i32
  }
  func.func @transform_2(%arg0: i32, %arg1: i32) -> (i32, i32) {
    %c0_i32 = arith.constant 0 : i32
    return %arg1, %arg0 : i32, i32
  }
}

</mosaic_0001>

<llo_original>
// kernel: tpu_custom_call.1
$region0: #{tpu_custom_call.1}
  #allocation0 [shape = 'u32[]', space=smem, size = 0x4, offset = 0x4, fixed_abs, tag = 'smem constant byte address 0x4 - core index']
  #allocation1 [shape = 'u32[72,128]{1,0:T(1,128)}', space=vmem, size = 0x9000, scoped, tag = 'internal scratch']
  %s0 = inlined_call_operand.hbm [shape: f32[2,256], index: 0, kind: input, shape index: {}]
  %s1 = inlined_call_operand.hbm [shape: f32[1,256], index: 1, kind: input, shape index: {}]
  %s2 = inlined_call_operand.hbm [shape: f32[2,256], index: 2, kind: output, shape index: {}]
  %s3 = sld [smem:[#allocation0]]
  $region26: #{tpu_custom_call.1} parent=0
    _
  %s5 = ssub.s32 1, %s3
  %s6 = scalar_select 0, %s5, %s3
  $region1: #{tpu_custom_call.1} parent=0
    #allocation2 [shape = 'u8[2048]{0}', space=vmem, size = 0x800, scoped, tag = 'input window, operand 0, single buffered']
    #allocation3 [shape = 's32[1]{0}', space=sflag, size = 0x4, scoped, tag = 'scoped memory for tpu_custom_call.1']
    #allocation4 [shape = 's32[1]{0}', space=sflag, size = 0x4, scoped, tag = 'scoped memory for tpu_custom_call.1']
    #allocation5 [shape = 'u8[1024]{0}', space=vmem, size = 0x400, scoped, tag = 'input window, operand 1, single buffered']
    #allocation6 [shape = 's32[1]{0}', space=sflag, size = 0x4, scoped, tag = 'scoped memory for tpu_custom_call.1']
    #allocation7 [shape = 'u8[2048]{0}', space=vmem, size = 0x800, scoped, tag = 'output window, operand 0, single buffered']
    %7 = vsyncpa [#allocation3], 0
    %8 = vsyncpa [#allocation6], 0
    %9 = vsyncpa [#allocation4], 0
    // Predicated region
    $region2: #{tpu_custom_call.1} parent=1 // pred_check
      _
    $region3: #{tpu_custom_call.1} parent=1 // pred_check_branch
      %11 = sbr.rel (0) target = $region5
    $region4: #{tpu_custom_call.1} parent=1 // pred_region
      %13 = vsyncadd [#allocation3], 0
      %s15 = sshll.u32 %s0, 4
      %s16 = int_to_ptr.hbm [resolvable:$true] %s15
      %s17 = sshll.u32 [#allocation2], 4
      %s18 = int_to_ptr.vmem [resolvable:$true] %s17
      %20 = dma.hbm_to_vmem [thread:$0]  %s16, 64, %s18, [#allocation3]
    $region5: #{tpu_custom_call.1} parent=1 // pred_fallthru
      _
    // Predicated region
    $region6: #{tpu_custom_call.1} parent=1 // pred_check
      _
    $region7: #{tpu_custom_call.1} parent=1 // pred_check_branch
      %22 = sbr.rel (0) target = $region9
    $region8: #{tpu_custom_call.1} parent=1 // pred_region
      %24 = vsyncadd [#allocation6], 0
      %s26 = sshll.u32 %s1, 4
      %s27 = int_to_ptr.hbm [resolvable:$true] %s26
      %s28 = sshll.u32 [#allocation5], 4
      %s29 = int_to_ptr.vmem [resolvable:$true] %s28
      %31 = dma.hbm_to_vmem [thread:$0]  %s27, 32, %s29, [#allocation6]
    $region9: #{tpu_custom_call.1} parent=1 // pred_fallthru
      _
    // Predicated region
    $region10: #{tpu_custom_call.1} parent=1 // pred_check
      _
    $region11: #{tpu_custom_call.1} parent=1 // pred_check_branch
      %33 = sbr.rel (0) target = $region13
    $region12: #{tpu_custom_call.1} parent=1 // pred_region
      %35 = dma.done [#allocation3], 64
    $region13: #{tpu_custom_call.1} parent=1 // pred_fallthru
      _
    // Predicated region
    $region14: #{tpu_custom_call.1} parent=1 // pred_check
      _
    $region15: #{tpu_custom_call.1} parent=1 // pred_check_branch
      %37 = sbr.rel (0) target = $region17
    $region16: #{tpu_custom_call.1} parent=1 // pred_region
      %39 = dma.done [#allocation6], 32
    $region17: #{tpu_custom_call.1} parent=1 // pred_fallthru
      _
    %v40 = vld [vmem:[#allocation2] sm:$0xf]
    %v41 = vld [vmem:[#allocation5] sm:$0x3]
    %v43 = vperm.slane %v41, 0
    %v44 = vperm.slane %v41, 1
    %v45 = vrot.slane %v44, 6
    %vm46 = vcmask 1041408
    %v47 = vsel %vm46, %v43, %v45
    %v49 = vadd.f32 %v40, %v47
    %50 = vst [vmem:[#allocation7] sm:$0xf] %v49
    // Predicated region
    $region18: #{tpu_custom_call.1} parent=1 // pred_check
      _
    $region19: #{tpu_custom_call.1} parent=1 // pred_check_branch
      %52 = sbr.rel (0) target = $region21
    $region20: #{tpu_custom_call.1} parent=1 // pred_region
      %54 = vsyncadd [#allocation4], 0
      %s56 = sshll.u32 [#allocation7], 4
      %s57 = int_to_ptr.vmem [resolvable:$true] %s56
      %s58 = sshll.u32 %s2, 4
      %s59 = int_to_ptr.hbm [resolvable:$true] %s58
      %61 = dma.vmem_to_hbm [thread:$0]  %s57, 64, %s59, [#allocation4]
    $region21: #{tpu_custom_call.1} parent=1 // pred_fallthru
      _
    // Predicated region
    $region22: #{tpu_custom_call.1} parent=1 // pred_check
      _
    $region23: #{tpu_custom_call.1} parent=1 // pred_check_branch
      %63 = sbr.rel (0) target = $region25
    $region24: #{tpu_custom_call.1} parent=1 // pred_region
      %65 = dma.done [#allocation4], 64
    $region25: #{tpu_custom_call.1} parent=1 // pred_fallthru
      _
    %66 = vsyncpa [#allocation3], 1
    %67 = vsyncpa [#allocation6], 1
    %68 = vsyncpa [#allocation4], 1

</llo_original>
